<compile_context>
chip_gen: v6e
topology: v6e:2x2x1
jax: 0.10.0
libtpu: 0.0.40
codegen_flags: <defaults>
</compile_context>

<pallas_src>
import jax
import jax.numpy as jnp
from jax import lax
from jax.experimental import pallas as pl
from jax.experimental.pallas import tpu as pltpu

EPS = 1e-5


def _round_up(n, m):
    return ((n + m - 1) // m) * m


def _vmem_capacity_bytes():
    """Physical VMEM per TensorCore; conservative fallback if query unavailable."""
    try:
        info = pltpu.get_tpu_info()
        for attr in ("vmem_capacity_bytes", "vmem_bytes"):
            v = getattr(info, attr, None)
            if v:
                return int(v)
    except Exception:
        pass
    return 64 << 20  # v7x per-core physical VMEM (smallest of the generations)


def _fold_bn_into_fc2(sum_h, sumsq_h, gamma, beta, w2_row, b2_scalar, inv_b):
    """Fold train-mode BatchNorm + fc2 into (w_eff, bias_eff) from global stats."""
    mean = sum_h * inv_b                                        # (1, H)
    # One-pass variance; clamp at 0 to guard f32 cancellation when mean >> std.
    var = jnp.maximum(sumsq_h * inv_b - mean * mean, 0.0)       # (1, H)
    s = gamma * lax.rsqrt(var + EPS)                            # (1, H)
    w_eff = s * w2_row                                          # (1, H)
    bias_eff = jnp.sum((beta - mean * s) * w2_row,
                       axis=1, keepdims=True) + b2_scalar       # (1, 1)
    return w_eff, bias_eff


def _single_tile_forward(x_pad, weights, *, B, TB, F, H, need_mask, out_dtype):
    """nt == 1 fast path: one grid step, stats + folded output in one body."""
    w1, b1, gamma, beta, w2_row, b2 = weights

    def kernel(x_ref, w1_ref, b1_ref, gamma_ref, beta_ref, w2_ref, b2_ref, o_ref):
        h = jnp.dot(x_ref[...], w1_ref[...], preferred_element_type=jnp.float32)
        h = jnp.maximum(h + b1_ref[...].astype(jnp.float32), 0.0)       # (TB, H)
        if need_mask:
            row = lax.broadcasted_iota(jnp.int32, (TB, H), 0)
            hm = jnp.where(row < B, h, 0.0)
        else:
            hm = h
        w_eff, bias_eff = _fold_bn_into_fc2(
            jnp.sum(hm, axis=0, keepdims=True),
            jnp.sum(hm * hm, axis=0, keepdims=True),
            gamma_ref[...].astype(jnp.float32),
            beta_ref[...].astype(jnp.float32),
            w2_ref[...].astype(jnp.float32),
            b2_ref[0, 0],
            jnp.float32(1.0 / B))
        # (1,H) x (TB,H)^T -> (1,TB): lane-dense result, full MXU columns.
        out = lax.dot_general(w_eff, h, (((1,), (1,)), ((), ())),
                              preferred_element_type=jnp.float32)
        o_ref[...] = (out + bias_eff).astype(o_ref.dtype)

    res = pl.pallas_call(
        kernel,
        out_shape=jax.ShapeDtypeStruct((1, TB), out_dtype),
        grid_spec=pltpu.PrefetchScalarGridSpec(
            num_scalar_prefetch=0,
            grid=(1,),
            in_specs=[
                pl.BlockSpec((TB, F), lambda i: (0, 0)),            # x
                pl.BlockSpec((F, H), lambda i: (0, 0)),             # w1
                pl.BlockSpec((1, H), lambda i: (0, 0)),             # b1
                pl.BlockSpec((1, H), lambda i: (0, 0)),             # gamma
                pl.BlockSpec((1, H), lambda i: (0, 0)),             # beta
                pl.BlockSpec((1, H), lambda i: (0, 0)),             # w2 row
                pl.BlockSpec(memory_space=pltpu.MemorySpace.SMEM),  # b2 scalar
            ],
            out_specs=pl.BlockSpec((1, TB), lambda i: (0, 0)),
        ),
        compiler_params=pltpu.CompilerParams(dimension_semantics=("arbitrary",)),
    )(x_pad, w1, b1, gamma, beta, w2_row, b2)
    return res[0, :B].reshape(B, 1)


def _multi_tile_forward(x_pad, weights, *, B, TB, F, H, nt, need_mask,
                        out_dtype, cache_h):
    """Two-pass path: pass 0 global BN stats, pass 1 folded output per tile."""
    w1, b1, gamma, beta, w2_row, b2 = weights
    itemsize = x_pad.dtype.itemsize

    hcache_bytes = nt * TB * H * 4
    work_bytes = (2 * TB * F * itemsize      # x double buffer
                  + 2 * TB * itemsize        # output double buffer
                  + F * H * itemsize         # resident w1
                  + 5 * H * 4 + 64           # resident (1,H) vectors + b2
                  + 4 * H * 4 + 64)          # VMEM scratch (sum/sumsq/w_eff/bias)
    cap = _vmem_capacity_bytes()
    if cache_h is None:
        cache_h = (hcache_bytes + work_bytes) <= int(0.6 * cap)

    def kernel(x_ref, w1_ref, b1_ref, gamma_ref, beta_ref, w2_ref, b2_ref,
               o_ref, sum_ref, sumsq_ref, weff_ref, bias_ref, *hc):
        hc_ref = hc[0] if cache_h else None
        p = pl.program_id(0)   # 0: accumulate global BN stats, 1: apply
        i = pl.program_id(1)   # batch tile

        def fc1():
            h = jnp.dot(x_ref[...], w1_ref[...],
                        preferred_element_type=jnp.float32)
            return jnp.maximum(h + b1_ref[...].astype(jnp.float32), 0.0)

        @pl.when((p == 0) & (i == 0))
        def _init():
            sum_ref[...] = jnp.zeros_like(sum_ref)
            sumsq_ref[...] = jnp.zeros_like(sumsq_ref)

        @pl.when(p == 0)
        def _stats():
            h = fc1()                                           # (TB, H) f32
            if cache_h:
                hc_ref[i] = h
            if need_mask:
                row = lax.broadcasted_iota(jnp.int32, (TB, H), 0) + i * TB
                hm = jnp.where(row < B, h, 0.0)
            else:
                hm = h
            sum_ref[...] += jnp.sum(hm, axis=0, keepdims=True)
            sumsq_ref[...] += jnp.sum(hm * hm, axis=0, keepdims=True)

        @pl.when((p == 1) & (i == 0))
        def _fold():
            w_eff, bias_eff = _fold_bn_into_fc2(
                sum_ref[...], sumsq_ref[...],
                gamma_ref[...].astype(jnp.float32),
                beta_ref[...].astype(jnp.float32),
                w2_ref[...].astype(jnp.float32),
                b2_ref[0, 0],
                jnp.float32(1.0 / B))
            weff_ref[...] = w_eff
            bias_ref[...] = bias_eff

        @pl.when(p == 1)
        def _apply():
            h = hc_ref[i] if cache_h else fc1()
            out = lax.dot_general(weff_ref[...], h, (((1,), (1,)), ((), ())),
                                  preferred_element_type=jnp.float32)  # (1, TB)
            o_ref[0] = (out + bias_ref[...]).astype(o_ref.dtype)

    # When h is cached, pass 1 does not need x: park its index map on tile 0 so
    # x is streamed from HBM only once (plus one tiny re-fetch of tile 0).
    if cache_h:
        x_index_map = lambda p, i: ((1 - p) * i, 0)
    else:
        x_index_map = lambda p, i: (i, 0)

    scratch = [pltpu.VMEM((1, H), jnp.float32),   # sum(h)
               pltpu.VMEM((1, H), jnp.float32),   # sum(h*h)
               pltpu.VMEM((1, H), jnp.float32),   # folded w_eff
               pltpu.VMEM((1, 1), jnp.float32)]   # folded bias_eff
    if cache_h:
        scratch.append(pltpu.VMEM((nt, TB, H), jnp.float32))  # cached h tiles

    compiler_kwargs = dict(dimension_semantics=("arbitrary", "arbitrary"))
    if cache_h:
        limit = hcache_bytes + work_bytes + (8 << 20)
        limit = max(16 << 20, min(limit, cap - (2 << 20)))
        compiler_kwargs["vmem_limit_bytes"] = int(limit)

    grid_spec = pltpu.PrefetchScalarGridSpec(
        num_scalar_prefetch=0,
        grid=(2, nt),
        in_specs=[
            pl.BlockSpec((TB, F), x_index_map),                 # x tile
            pl.BlockSpec((F, H), lambda p, i: (0, 0)),          # w1 (resident)
            pl.BlockSpec((1, H), lambda p, i: (0, 0)),          # b1
            pl.BlockSpec((1, H), lambda p, i: (0, 0)),          # gamma
            pl.BlockSpec((1, H), lambda p, i: (0, 0)),          # beta
            pl.BlockSpec((1, H), lambda p, i: (0, 0)),          # w2 row
            pl.BlockSpec(memory_space=pltpu.MemorySpace.SMEM),  # b2 scalar
        ],
        # Pass 0 parks on block 0 (never written); pass 1 writes block i.
        # Block 0's single contiguous run ends after pass-1 i=0, so its final
        # contents are the real result; every block is visited exactly once.
        out_specs=pl.BlockSpec((1, 1, TB), lambda p, i: (p * i, 0, 0)),
        scratch_shapes=scratch,
    )

    res = pl.pallas_call(
        kernel,
        out_shape=jax.ShapeDtypeStruct((nt, 1, TB), out_dtype),
        grid_spec=grid_spec,
        compiler_params=pltpu.CompilerParams(**compiler_kwargs),
    )(x_pad, w1, b1, gamma, beta, w2_row, b2)

    return res[:, 0, :].reshape(-1)[:B].reshape(B, 1)


def ptt_regression_head(x, params, *, tile_b=1024, cache_h=None):
    """Forward pass of PTTRegressionHead. x: (B, in_features) -> (B, 1)."""
    B, F = x.shape
    H = params["w1"].shape[1]
    assert tile_b % 8 == 0
    out_dtype = x.dtype

    # Feed the MXU in x's dtype (f32 accumulation); bias/BN params stay f32.
    w1 = params["w1"].astype(x.dtype)
    weights = (w1, params["b1"], params["gamma"], params["beta"],
               params["w2"].reshape(1, H), params["b2"])

    TB = min(tile_b, _round_up(B, 8))
    B_pad = _round_up(B, TB)
    nt = B_pad // TB
    need_mask = B_pad != B
    if need_mask:
        # Padded rows are masked out of the BN statistics and sliced off below.
        x = jnp.pad(x, ((0, B_pad - B), (0, 0)))

    if nt == 1:
        return _single_tile_forward(x, weights, B=B, TB=TB, F=F, H=H,
                                    need_mask=need_mask, out_dtype=out_dtype)
    return _multi_tile_forward(x, weights, B=B, TB=TB, F=F, H=H, nt=nt,
                               need_mask=need_mask, out_dtype=out_dtype,
                               cache_h=cache_h)


def init_params(key, in_features, hidden_features):
    """Deterministic init mimicking PyTorch defaults (U(-1/sqrt(fan_in), +))."""
    k1, k2, k3, k4 = jax.random.split(key, 4)
    bound1 = 1.0 / jnp.sqrt(in_features)
    bound2 = 1.0 / jnp.sqrt(hidden_features)
    return {
        # Linear 1: stored transposed -> (in, hidden)
        "w1": jax.random.uniform(k1, (in_features, hidden_features),
                                 jnp.float32, -bound1, bound1),
        "b1": jax.random.uniform(k2, (1, hidden_features),
                                 jnp.float32, -bound1, bound1),
        # BatchNorm1d: weight=1, bias=0 at init
        "gamma": jnp.ones((1, hidden_features), jnp.float32),
        "beta": jnp.zeros((1, hidden_features), jnp.float32),
        # Linear 2: stored transposed -> (hidden, 1)
        "w2": jax.random.uniform(k3, (hidden_features, 1),
                                 jnp.float32, -bound2, bound2),
        "b2": jax.random.uniform(k4, (1, 1), jnp.float32, -bound2, bound2),
    }


def reference_forward(x, p):
    """Pure-JAX reference matching PyTorch forward (training-mode BN)."""
    h = x @ p["w1"] + p["b1"]
    h = jnp.maximum(h, 0.0)
    mean = jnp.mean(h, axis=0, keepdims=True)
    var = jnp.mean((h - mean) ** 2, axis=0, keepdims=True)
    h = (h - mean) / jnp.sqrt(var + EPS) * p["gamma"] + p["beta"]
    return h @ p["w2"] + p["b2"]


if __name__ == "__main__":
    IN_FEATURES, HIDDEN = 32, 64
    key = jax.random.PRNGKey(0)
    kx, kp, kx2 = jax.random.split(key, 3)
    params = init_params(kp, IN_FEATURES, HIDDEN)

    # 1) Small-batch fast path (single grid step).
    B = 8
    x = jax.random.normal(kx, (B, IN_FEATURES), jnp.float32)
    out = jax.block_until_ready(ptt_regression_head(x, params))
    ref = reference_forward(x, params)
    assert out.shape == (B, 1)
    assert jnp.allclose(out, ref, atol=2e-4, rtol=2e-4), \
        float(jnp.max(jnp.abs(out - ref)))

    # 2) Batch-tiled two-pass path with the h VMEM cache (small tile -> nt > 1).
    B2 = 200
    x2 = jax.random.normal(kx2, (B2, IN_FEATURES), jnp.float32)
    ref2 = reference_forward(x2, params)
    out2 = jax.block_until_ready(
        ptt_regression_head(x2, params, tile_b=64, cache_h=True))
    assert out2.shape == (B2, 1)
    assert jnp.allclose(out2, ref2, atol=2e-4, rtol=2e-4), \
        float(jnp.max(jnp.abs(out2 - ref2)))

    # 3) Same shape, recompute fallback (h not cached, x streamed twice).
    out3 = jax.block_until_ready(
        ptt_regression_head(x2, params, tile_b=64, cache_h=False))
    assert jnp.allclose(out3, ref2, atol=2e-4, rtol=2e-4), \
        float(jnp.max(jnp.abs(out3 - ref2)))

    print("KERNEL_OK")
</pallas_src>

<mosaic_0001>
module attributes {stable_mosaic.version = 11 : i64} {
  func.func @kernel(%arg0: i32, %arg1: memref<8x32xf32, #tpu.memory_space<vmem>>, %arg2: memref<32x64xf32, #tpu.memory_space<vmem>>, %arg3: memref<1x64xf32, #tpu.memory_space<vmem>>, %arg4: memref<1x64xf32, #tpu.memory_space<vmem>>, %arg5: memref<1x64xf32, #tpu.memory_space<vmem>>, %arg6: memref<1x64xf32, #tpu.memory_space<vmem>>, %arg7: memref<1x1xf32, #tpu.memory_space<smem>>, %arg8: memref<1x8xf32, #tpu.memory_space<vmem>>) attributes {dimension_semantics = [#tpu.dimension_semantics<arbitrary>], iteration_bounds = array<i64: 1>, scalar_prefetch = 0 : i64, scratch_operands = 0 : i64, tpu.core_type = #tpu.core_type<tc>, window_params = [{pipeline_mode = #tpu.pipeline_mode<synchronous>, transform_indices = @transform_0, window_bounds = array<i64: 8, 32>}, {pipeline_mode = #tpu.pipeline_mode<synchronous>, transform_indices = @transform_1, window_bounds = array<i64: 32, 64>}, {pipeline_mode = #tpu.pipeline_mode<synchronous>, transform_indices = @transform_2, window_bounds = array<i64: 1, 64>}, {pipeline_mode = #tpu.pipeline_mode<synchronous>, transform_indices = @transform_3, window_bounds = array<i64: 1, 64>}, {pipeline_mode = #tpu.pipeline_mode<synchronous>, transform_indices = @transform_4, window_bounds = array<i64: 1, 64>}, {pipeline_mode = #tpu.pipeline_mode<synchronous>, transform_indices = @transform_5, window_bounds = array<i64: 1, 64>}, {transform_indices = @transform_6, window_bounds = array<i64: 1, 1>}, {pipeline_mode = #tpu.pipeline_mode<synchronous>, transform_indices = @transform_7, window_bounds = array<i64: 1, 8>}]} {
    %c0 = arith.constant 0 : index
    %c0_0 = arith.constant 0 : index
    %0 = vector.load %arg1[%c0, %c0_0] : memref<8x32xf32, #tpu.memory_space<vmem>>, vector<8x32xf32>
    %c0_1 = arith.constant 0 : index
    %c0_2 = arith.constant 0 : index
    %1 = vector.load %arg2[%c0_1, %c0_2] : memref<32x64xf32, #tpu.memory_space<vmem>>, vector<32x64xf32>
    %cst = arith.constant dense<0.000000e+00> : vector<8x64xf32>
    %2 = tpu.matmul %0, %1, %cst {dimension_numbers = #tpu.dot_dimension_numbers<[1], [0], [0], [1], [0, 0, 1, 1], [], []>} : vector<8x32xf32>, vector<32x64xf32>, vector<8x64xf32> -> vector<8x64xf32>
    %c0_3 = arith.constant 0 : index
    %c0_4 = arith.constant 0 : index
    %3 = vector.load %arg3[%c0_3, %c0_4] : memref<1x64xf32, #tpu.memory_space<vmem>>, vector<1x64xf32>
    %4 = vector.broadcast %3 : vector<1x64xf32> to vector<8x64xf32>
    %5 = arith.addf %2, %4 : vector<8x64xf32>
    %cst_5 = arith.constant 0.000000e+00 : f32
    %6 = vector.broadcast %cst_5 : f32 to vector<8x64xf32>
    %7 = arith.maximumf %5, %6 : vector<8x64xf32>
    %cst_6 = arith.constant dense<0.000000e+00> : vector<64xf32>
    %8 = vector.multi_reduction <add>, %7, %cst_6 [0] : vector<8x64xf32> to vector<64xf32>
    %9 = vector.shape_cast %8 : vector<64xf32> to vector<1x64xf32>
    %10 = arith.mulf %7, %7 : vector<8x64xf32>
    %cst_7 = arith.constant dense<0.000000e+00> : vector<64xf32>
    %11 = vector.multi_reduction <add>, %10, %cst_7 [0] : vector<8x64xf32> to vector<64xf32>
    %12 = vector.shape_cast %11 : vector<64xf32> to vector<1x64xf32>
    %c0_8 = arith.constant 0 : index
    %c0_9 = arith.constant 0 : index
    %13 = vector.load %arg4[%c0_8, %c0_9] : memref<1x64xf32, #tpu.memory_space<vmem>>, vector<1x64xf32>
    %c0_10 = arith.constant 0 : index
    %c0_11 = arith.constant 0 : index
    %14 = vector.load %arg5[%c0_10, %c0_11] : memref<1x64xf32, #tpu.memory_space<vmem>>, vector<1x64xf32>
    %c0_12 = arith.constant 0 : index
    %c0_13 = arith.constant 0 : index
    %15 = vector.load %arg6[%c0_12, %c0_13] : memref<1x64xf32, #tpu.memory_space<vmem>>, vector<1x64xf32>
    %c0_14 = arith.constant 0 : index
    %c0_15 = arith.constant 0 : index
    %16 = memref.load %arg7[%c0_14, %c0_15] : memref<1x1xf32, #tpu.memory_space<smem>>
    %cst_16 = arith.constant 1.250000e-01 : f32
    %17 = vector.broadcast %cst_16 : f32 to vector<1x64xf32>
    %18 = arith.mulf %9, %17 : vector<1x64xf32>
    %cst_17 = arith.constant 1.250000e-01 : f32
    %19 = vector.broadcast %cst_17 : f32 to vector<1x64xf32>
    %20 = arith.mulf %12, %19 : vector<1x64xf32>
    %21 = arith.mulf %18, %18 : vector<1x64xf32>
    %22 = arith.subf %20, %21 : vector<1x64xf32>
    %cst_18 = arith.constant 0.000000e+00 : f32
    %23 = vector.broadcast %cst_18 : f32 to vector<1x64xf32>
    %24 = arith.maximumf %22, %23 : vector<1x64xf32>
    %cst_19 = arith.constant 9.99999974E-6 : f32
    %25 = vector.broadcast %cst_19 : f32 to vector<1x64xf32>
    %26 = arith.addf %24, %25 : vector<1x64xf32>
    %27 = math.rsqrt %26 : vector<1x64xf32>
    %28 = arith.mulf %13, %27 : vector<1x64xf32>
    %29 = arith.mulf %28, %15 : vector<1x64xf32>
    %30 = arith.mulf %18, %28 : vector<1x64xf32>
    %31 = arith.subf %14, %30 : vector<1x64xf32>
    %32 = arith.mulf %31, %15 : vector<1x64xf32>
    %cst_20 = arith.constant dense<0.000000e+00> : vector<1xf32>
    %33 = vector.multi_reduction <add>, %32, %cst_20 [1] : vector<1x64xf32> to vector<1xf32>
    %34 = vector.shape_cast %33 : vector<1xf32> to vector<1x1xf32>
    %35 = vector.broadcast %16 : f32 to vector<1x1xf32>
    %36 = arith.addf %34, %35 : vector<1x1xf32>
    %cst_21 = arith.constant dense<0.000000e+00> : vector<1x8xf32>
    %37 = tpu.matmul %29, %7, %cst_21 {dimension_numbers = #tpu.dot_dimension_numbers<[1], [1], [0], [0], [0, 0, 1, 0], [], []>} : vector<1x64xf32>, vector<8x64xf32>, vector<1x8xf32> -> vector<1x8xf32>
    %38 = vector.broadcast %36 : vector<1x1xf32> to vector<1x8xf32>
    %39 = arith.addf %37, %38 : vector<1x8xf32>
    %c0_22 = arith.constant 0 : index
    %c0_23 = arith.constant 0 : index
    %40 = vector.load %arg8[%c0_22, %c0_23] : memref<1x8xf32, #tpu.memory_space<vmem>>, vector<1x8xf32>
    tpu.vector_store %arg8[%c0_22, %c0_23], %39 {strides = array<i32>} : memref<1x8xf32, #tpu.memory_space<vmem>>, vector<1x8xf32>,
    return
  }
  func.func @transform_0(%arg0: i32) -> (i32, i32) {
    %c0_i32 = arith.constant 0 : i32
    %c0_i32_0 = arith.constant 0 : i32
    %c0_i32_1 = arith.constant 0 : i32
    return %c0_i32, %c0_i32_0 : i32, i32
  }
  func.func @transform_1(%arg0: i32) -> (i32, i32) {
    %c0_i32 = arith.constant 0 : i32
    %c0_i32_0 = arith.constant 0 : i32
    %c0_i32_1 = arith.constant 0 : i32
    return %c0_i32, %c0_i32_0 : i32, i32
  }
  func.func @transform_2(%arg0: i32) -> (i32, i32) {
    %c0_i32 = arith.constant 0 : i32
    %c0_i32_0 = arith.constant 0 : i32
    %c0_i32_1 = arith.constant 0 : i32
    return %c0_i32, %c0_i32_0 : i32, i32
  }
  func.func @transform_3(%arg0: i32) -> (i32, i32) {
    %c0_i32 = arith.constant 0 : i32
    %c0_i32_0 = arith.constant 0 : i32
    %c0_i32_1 = arith.constant 0 : i32
    return %c0_i32, %c0_i32_0 : i32, i32
  }
  func.func @transform_4(%arg0: i32) -> (i32, i32) {
    %c0_i32 = arith.constant 0 : i32
    %c0_i32_0 = arith.constant 0 : i32
    %c0_i32_1 = arith.constant 0 : i32
    return %c0_i32, %c0_i32_0 : i32, i32
  }
  func.func @transform_5(%arg0: i32) -> (i32, i32) {
    %c0_i32 = arith.constant 0 : i32
    %c0_i32_0 = arith.constant 0 : i32
    %c0_i32_1 = arith.constant 0 : i32
    return %c0_i32, %c0_i32_0 : i32, i32
  }
  func.func @transform_6(%arg0: i32) -> (i32, i32) {
    %c0_i32 = arith.constant 0 : i32
    %c0_i32_0 = arith.constant 0 : i32
    %c0_i32_1 = arith.constant 0 : i32
    return %c0_i32, %c0_i32_0 : i32, i32
  }
  func.func @transform_7(%arg0: i32) -> (i32, i32) {
    %c0_i32 = arith.constant 0 : i32
    %c0_i32_0 = arith.constant 0 : i32
    %c0_i32_1 = arith.constant 0 : i32
    return %c0_i32, %c0_i32_0 : i32, i32
  }
}

</mosaic_0001>

<llo_original>
// kernel: tpu_custom_call.1
$region0: #{tpu_custom_call.1}
  #allocation0 [shape = 'u32[]', space=smem, size = 0x4, offset = 0x4, fixed_abs, tag = 'smem constant byte address 0x4 - core index']
  #allocation1 [shape = 'u32[144,128]{1,0:T(1,128)}', space=vmem, size = 0x12000, scoped, tag = 'internal scratch']
  #allocation2 [shape = 'f32[1,1]{1,0:T(1,128)S(6)}', space=smem, size = 0x200, scoped, tag = 'scoped memory for tpu_custom_call.1']
  %s0 = inlined_call_operand.hbm [shape: f32[8,32], index: 0, kind: input, shape index: {}]
  %s1 = inlined_call_operand.hbm [shape: f32[32,64], index: 1, kind: input, shape index: {}]
  %s2 = inlined_call_operand.vmem [shape: f32[1,64], index: 2, kind: input, shape index: {}]
  %s3 = inlined_call_operand.vmem [shape: f32[1,64], index: 3, kind: input, shape index: {}]
  %s4 = inlined_call_operand.vmem [shape: f32[1,64], index: 4, kind: input, shape index: {}]
  %s5 = inlined_call_operand.vmem [shape: f32[1,64], index: 5, kind: input, shape index: {}]
  %s6 = inlined_call_operand.<no memory space> [shape: f32[1,1], index: 6, kind: input, shape index: {}]
  %s7 = inlined_call_operand.hbm [shape: f32[1,8], index: 7, kind: output, shape index: {}]
  %s8 = sld [smem:[#allocation0]]
  $region46: #{tpu_custom_call.1} parent=0
    _
  %s10 = ssub.s32 1, %s8
  %s11 = scalar_select 0, %s10, %s8
  %12 = sst [smem:[#allocation2]] %s6
  $region1: #{tpu_custom_call.1} parent=0
    #allocation3 [shape = 'u8[4096]{0}', space=vmem, size = 0x1000, scoped, tag = 'input window, operand 0, single buffered']
    #allocation4 [shape = 's32[1]{0}', space=sflag, size = 0x4, scoped, tag = 'scoped memory for tpu_custom_call.1']
    #allocation5 [shape = 's32[1]{0}', space=sflag, size = 0x4, scoped, tag = 'scoped memory for tpu_custom_call.1']
    #allocation6 [shape = 'u8[16384]{0}', space=vmem, size = 0x4000, scoped, tag = 'input window, operand 1, single buffered']
    #allocation7 [shape = 's32[1]{0}', space=sflag, size = 0x4, scoped, tag = 'scoped memory for tpu_custom_call.1']
    #allocation8 [shape = 'u8[512]{0}', space=vmem, size = 0x400, scoped, tag = 'output window, operand 0, single buffered']
    %13 = vsyncpa [#allocation4], 0
    %14 = vsyncpa [#allocation7], 0
    %15 = vsyncpa [#allocation5], 0
    // Predicated region
    $region2: #{tpu_custom_call.1} parent=1 // pred_check
      _
    $region3: #{tpu_custom_call.1} parent=1 // pred_check_branch
      %17 = sbr.rel (0) target = $region5
    $region4: #{tpu_custom_call.1} parent=1 // pred_region
      %s19 = ssub.s32 128, 128
      %20 = vsyncadd [#allocation4], %s19
      %s22 = sshll.u32 [#allocation3], 4
      %s23 = int_to_ptr.vmem [resolvable:$true] %s22
      %25 = dma.hbm_to_vmem [thread:$0]  %s0, 128, %s23, [#allocation4]
    $region5: #{tpu_custom_call.1} parent=1 // pred_fallthru
      _
    // Predicated region
    $region6: #{tpu_custom_call.1} parent=1 // pred_check
      _
    $region7: #{tpu_custom_call.1} parent=1 // pred_check_branch
      %27 = sbr.rel (0) target = $region9
    $region8: #{tpu_custom_call.1} parent=1 // pred_region
      %s29 = ssub.s32 512, 512
      %30 = vsyncadd [#allocation7], %s29
      %s31 = sshll.u32 [#allocation6], 4
      %s32 = int_to_ptr.vmem [resolvable:$true] %s31
      %37 = dma.hbm_to_vmem [thread:$0]  %s1, 512, %s32, [#allocation7], 128, 128, 8
    $region9: #{tpu_custom_call.1} parent=1 // pred_fallthru
      _
    // Predicated region
    $region10: #{tpu_custom_call.1} parent=1 // pred_check
      _
    $region11: #{tpu_custom_call.1} parent=1 // pred_check_branch
      %39 = sbr.rel (0) target = $region13
    $region12: #{tpu_custom_call.1} parent=1 // pred_region
      _
    $region13: #{tpu_custom_call.1} parent=1 // pred_fallthru
      _
    // Predicated region
    $region14: #{tpu_custom_call.1} parent=1 // pred_check
      _
    $region15: #{tpu_custom_call.1} parent=1 // pred_check_branch
      %41 = sbr.rel (0) target = $region17
    $region16: #{tpu_custom_call.1} parent=1 // pred_region
      _
    $region17: #{tpu_custom_call.1} parent=1 // pred_fallthru
      _
    // Predicated region
    $region18: #{tpu_custom_call.1} parent=1 // pred_check
      _
    $region19: #{tpu_custom_call.1} parent=1 // pred_check_branch
      %43 = sbr.rel (0) target = $region21
    $region20: #{tpu_custom_call.1} parent=1 // pred_region
      _
    $region21: #{tpu_custom_call.1} parent=1 // pred_fallthru
      _
    // Predicated region
    $region22: #{tpu_custom_call.1} parent=1 // pred_check
      _
    $region23: #{tpu_custom_call.1} parent=1 // pred_check_branch
      %45 = sbr.rel (0) target = $region25
    $region24: #{tpu_custom_call.1} parent=1 // pred_region
      _
    $region25: #{tpu_custom_call.1} parent=1 // pred_fallthru
      _
    // Predicated region
    $region26: #{tpu_custom_call.1} parent=1 // pred_check
      _
    $region27: #{tpu_custom_call.1} parent=1 // pred_check_branch
      %47 = sbr.rel (0) target = $region29
    $region28: #{tpu_custom_call.1} parent=1 // pred_region
      _
    $region29: #{tpu_custom_call.1} parent=1 // pred_fallthru
      _
    // Predicated region
    $region30: #{tpu_custom_call.1} parent=1 // pred_check
      _
    $region31: #{tpu_custom_call.1} parent=1 // pred_check_branch
      %49 = sbr.rel (0) target = $region33
    $region32: #{tpu_custom_call.1} parent=1 // pred_region
      %50 = dma.done [#allocation4], 128
    $region33: #{tpu_custom_call.1} parent=1 // pred_fallthru
      _
    // Predicated region
    $region34: #{tpu_custom_call.1} parent=1 // pred_check
      _
    $region35: #{tpu_custom_call.1} parent=1 // pred_check_branch
      %52 = sbr.rel (0) target = $region37
    $region36: #{tpu_custom_call.1} parent=1 // pred_region
      %53 = dma.done [#allocation7], 512
    $region37: #{tpu_custom_call.1} parent=1 // pred_fallthru
      _
    %v54 = vld [vmem:[#allocation3] sm:$0xff]
    %v55 = vld [vmem:[#allocation6] sm:$0xff]
    %v56 = vld [vmem:[#allocation6 + $0x8] sm:$0xff]
    %v57 = vld [vmem:[#allocation6 + $0x10] sm:$0xff]
    %v58 = vld [vmem:[#allocation6 + $0x18] sm:$0xff]
    %v59 = vld [vmem:[%s2] sm:$0x1]
    %v61 = vlaneseq
    %v62 = vshrl.u32 %v61, 7
    %v63 = vsub.s32 0, %v62
    %v64 = vrot.slane %v59, %v63
    %vm66 = vcmask 261120
    %v68 = vsel %vm66, %v54, 0
    %70 = vmatprep.subr.mxu0 0.0
    %71 = vmatpush1.msra.mxu0 0.0
    %72 = vmatprep.subr.mxu0 0.0
    %73 = vmatpush1.msra.mxu0 0.0
    %74 = vmatprep.subr.mxu0 0.0
    %75 = vmatpush1.msra.mxu0 0.0
    %76 = vmatprep.subr.mxu0 0.0
    %77 = vmatpush1.msra.mxu0 0.0
    %78 = vmatprep.subr.mxu0 0.0
    %79 = vmatpush1.msra.mxu0 0.0
    %80 = vmatprep.subr.mxu0 0.0
    %81 = vmatpush1.msra.mxu0 0.0
    %82 = vmatprep.subr.mxu0 0.0
    %83 = vmatpush1.msra.mxu0 0.0
    %84 = vmatprep.subr.mxu0 0.0
    %85 = vmatpush1.msra.mxu0 0.0
    %86 = vmatprep.subr.mxu0 0.0
    %87 = vmatpush1.msra.mxu0 0.0
    %88 = vmatprep.subr.mxu0 0.0
    %89 = vmatpush1.msra.mxu0 0.0
    %90 = vmatprep.subr.mxu0 0.0
    %91 = vmatpush1.msra.mxu0 0.0
    %92 = vmatprep.subr.mxu0 0.0
    %93 = vmatpush1.msra.mxu0 0.0
    %94 = vmatprep.subr.mxu0 0.0
    %95 = vmatpush1.msra.mxu0 %v58
    %96 = vmatprep.subr.mxu0 0.0
    %97 = vmatpush1.msra.mxu0 %v57
    %98 = vmatprep.subr.mxu0 0.0
    %99 = vmatpush1.msra.mxu0 %v56
    %100 = vmatprep.subr.mxu0 0.0
    %101 = vmatpush1.msra.mxu0 %v55
    %102 = vmatprep.subr.mxu0 0.0
    %103 = vmatpush2.msra.mxu0 0.0
    %104 = vmatprep.subr.mxu0 0.0
    %105 = vmatpush2.msra.mxu0 0.0
    %106 = vmatprep.subr.mxu0 0.0
    %107 = vmatpush2.msra.mxu0 0.0
    %108 = vmatprep.subr.mxu0 0.0
    %109 = vmatpush2.msra.mxu0 0.0
    %110 = vmatprep.subr.mxu0 0.0
    %111 = vmatpush2.msra.mxu0 0.0
    %112 = vmatprep.subr.mxu0 0.0
    %113 = vmatpush2.msra.mxu0 0.0
    %114 = vmatprep.subr.mxu0 0.0
    %115 = vmatpush2.msra.mxu0 0.0
    %116 = vmatprep.subr.mxu0 0.0
    %117 = vmatpush2.msra.mxu0 0.0
    %118 = vmatprep.subr.mxu0 0.0
    %119 = vmatpush2.msra.mxu0 0.0
    %120 = vmatprep.subr.mxu0 0.0
    %121 = vmatpush2.msra.mxu0 0.0
    %122 = vmatprep.subr.mxu0 0.0
    %123 = vmatpush2.msra.mxu0 0.0
    %124 = vmatprep.subr.mxu0 0.0
    %125 = vmatpush2.msra.mxu0 0.0
    %126 = vmatprep.subr.mxu0 0.0
    %127 = vmatpush2.msra.mxu0 0.0
    %128 = vmatprep.subr.mxu0 0.0
    %129 = vmatpush2.msra.mxu0 0.0
    %130 = vmatprep.subr.mxu0 0.0
    %131 = vmatpush2.msra.mxu0 0.0
    %132 = vmatprep.subr.mxu0 0.0
    %133 = vmatpush2.msra.mxu0 0.0
    %134 = vmatprep.mubr.f32.mxu0 0.0
    %135 = vmatmul.mubr.f32.gmra.mxu0 %v68
    %v136 = vpop.f32.mrf.mxu0
    %v137 = vadd.f32 %v64, %v136
    %v138 = vpop.f32.mrf.mxu0
    %139 = vdwg.mxu0
    %v140 = vmax.f32 %v137, 0.0
    %vm141 = vcmask 523264
    %v142 = vsel %vm141, %v140, 0.0
    %v143 = vrot.slane %v142, 4
    %v144 = vadd.f32 %v142, %v143
    %v145 = vrot.slane %v144, 2
    %v146 = vadd.f32 %v144, %v145
    %v147 = vrot.slane %v146, 1
    %v148 = vadd.f32 %v146, %v147
    %v149 = vmul.f32 %v140, %v140
    %v150 = vsel %vm141, %v149, 0.0
    %v151 = vrot.slane %v150, 4
    %v152 = vadd.f32 %v150, %v151
    %v153 = vrot.slane %v152, 2
    %v154 = vadd.f32 %v152, %v153
    %v155 = vrot.slane %v154, 1
    %v156 = vadd.f32 %v154, %v155
    %v157 = vld [vmem:[%s3] sm:$0x1]
    %v158 = vld [vmem:[%s4] sm:$0x1]
    %v159 = vld [vmem:[%s5] sm:$0x1]
    %s160 = sld [smem:[#allocation2]]
    %v161 = vmul.f32 %v148, 0.125
    %v162 = vmul.f32 %v156, 0.125
    %v163 = vmul.f32 %v161, %v161
    %v164 = vsub.f32 %v162, %v163
    %v165 = vmax.f32 %v164, 0.0
    %v166 = vadd.f32 %v165, 1e-05
    %v167 = vrsqrt.pop %v166
    %v168 = vmul.f32 %v157, %v167
    %v169 = vmul.f32 %v168, %v159
    %v170 = vmul.f32 %v161, %v168
    %v171 = vsub.f32 %v158, %v170
    %v172 = vmul.f32 %v171, %v159
    %vm173 = vcmask 516096
    %v174 = vsel %vm173, %v172, 0.0
    %175 = vadd.xlane.f32.xlu0 %v174
    %v176 = vpop.xlane.xlu0 %175
    %v177 = vstv %s160
    %v178 = vadd.f32 %v176, %v177
    %v180 = vsel %vm141, %v169, 0
    %v183 = vsel %vm141, %v140, 0
    %185 = vmatprep.subr.mxu0 0.0
    %186 = vmatpush1.xpose.msra.mxu0 0.0
    %187 = vmatprep.subr.mxu0 0.0
    %188 = vmatpush1.xpose.msra.mxu0 0.0
    %189 = vmatprep.subr.mxu0 0.0
    %190 = vmatpush1.xpose.msra.mxu0 0.0
    %191 = vmatprep.subr.mxu0 0.0
    %192 = vmatpush1.xpose.msra.mxu0 0.0
    %193 = vmatprep.subr.mxu0 0.0
    %194 = vmatpush1.xpose.msra.mxu0 0.0
    %195 = vmatprep.subr.mxu0 0.0
    %196 = vmatpush1.xpose.msra.mxu0 0.0
    %197 = vmatprep.subr.mxu0 0.0
    %198 = vmatpush1.xpose.msra.mxu0 0.0
    %199 = vmatprep.subr.mxu0 0.0
    %200 = vmatpush1.xpose.msra.mxu0 0.0
    %201 = vmatprep.subr.mxu0 0.0
    %202 = vmatpush1.xpose.msra.mxu0 0.0
    %203 = vmatprep.subr.mxu0 0.0
    %204 = vmatpush1.xpose.msra.mxu0 0.0
    %205 = vmatprep.subr.mxu0 0.0
    %206 = vmatpush1.xpose.msra.mxu0 0.0
    %207 = vmatprep.subr.mxu0 0.0
    %208 = vmatpush1.xpose.msra.mxu0 0.0
    %209 = vmatprep.subr.mxu0 0.0
    %210 = vmatpush1.xpose.msra.mxu0 0.0
    %211 = vmatprep.subr.mxu0 0.0
    %212 = vmatpush1.xpose.msra.mxu0 0.0
    %213 = vmatprep.subr.mxu0 0.0
    %214 = vmatpush1.xpose.msra.mxu0 0.0
    %215 = vmatprep.subr.mxu0 0.0
    %216 = vmatpush1.xpose.msra.mxu0 %v183
    %217 = vmatprep.subr.mxu0 0.0
    %218 = vmatpush2.xpose.msra.mxu0 0.0
    %219 = vmatprep.subr.mxu0 0.0
    %220 = vmatpush2.xpose.msra.mxu0 0.0
    %221 = vmatprep.subr.mxu0 0.0
    %222 = vmatpush2.xpose.msra.mxu0 0.0
    %223 = vmatprep.subr.mxu0 0.0
    %224 = vmatpush2.xpose.msra.mxu0 0.0
    %225 = vmatprep.subr.mxu0 0.0
    %226 = vmatpush2.xpose.msra.mxu0 0.0
    %227 = vmatprep.subr.mxu0 0.0
    %228 = vmatpush2.xpose.msra.mxu0 0.0
    %229 = vmatprep.subr.mxu0 0.0
    %230 = vmatpush2.xpose.msra.mxu0 0.0
    %231 = vmatprep.subr.mxu0 0.0
    %232 = vmatpush2.xpose.msra.mxu0 0.0
    %233 = vmatprep.subr.mxu0 0.0
    %234 = vmatpush2.xpose.msra.mxu0 0.0
    %235 = vmatprep.subr.mxu0 0.0
    %236 = vmatpush2.xpose.msra.mxu0 0.0
    %237 = vmatprep.subr.mxu0 0.0
    %238 = vmatpush2.xpose.msra.mxu0 0.0
    %239 = vmatprep.subr.mxu0 0.0
    %240 = vmatpush2.xpose.msra.mxu0 0.0
    %241 = vmatprep.subr.mxu0 0.0
    %242 = vmatpush2.xpose.msra.mxu0 0.0
    %243 = vmatprep.subr.mxu0 0.0
    %244 = vmatpush2.xpose.msra.mxu0 0.0
    %245 = vmatprep.subr.mxu0 0.0
    %246 = vmatpush2.xpose.msra.mxu0 0.0
    %247 = vmatprep.subr.mxu0 0.0
    %248 = vmatpush2.xpose.msra.mxu0 0.0
    %249 = vmatprep.mubr.f32.mxu0 0.0
    %250 = vmatmul.mubr.f32.gmra.mxu0 %v180
    %v251 = vpop.f32.mrf.mxu0
    %v252 = vadd.f32 %v178, %v251
    %v253 = vpop.f32.mrf.mxu0
    %254 = vdwg.mxu0
    %vm255 = vcmask 57344
    %256 = vst.msk [vmem:[#allocation8] sm:$0x1] %vm255, %v252
    // Predicated region
    $region38: #{tpu_custom_call.1} parent=1 // pred_check
      _
    $region39: #{tpu_custom_call.1} parent=1 // pred_check_branch
      %258 = sbr.rel (0) target = $region41
    $region40: #{tpu_custom_call.1} parent=1 // pred_region
      %s260 = ssub.s32 16, 16
      %261 = vsyncadd [#allocation5], %s260
      %s263 = sshll.u32 [#allocation8], 4
      %s264 = int_to_ptr.vmem [resolvable:$true] %s263
      %266 = dma.vmem_to_hbm [thread:$0]  %s264, 16, %s7, [#allocation5]
    $region41: #{tpu_custom_call.1} parent=1 // pred_fallthru
      _
    // Predicated region
    $region42: #{tpu_custom_call.1} parent=1 // pred_check
      _
    $region43: #{tpu_custom_call.1} parent=1 // pred_check_branch
      %268 = sbr.rel (0) target = $region45
    $region44: #{tpu_custom_call.1} parent=1 // pred_region
      %269 = dma.done [#allocation5], 16
    $region45: #{tpu_custom_call.1} parent=1 // pred_fallthru
      _
    %270 = vsyncpa [#allocation4], 1
    %271 = vsyncpa [#allocation7], 1
    %272 = vsyncpa [#allocation5], 1

</llo_original>
